<compile_context>
chip_gen: v5e
topology: v5e:2x2
jax: 0.10.0
libtpu: 0.0.40
codegen_flags: <defaults>
</compile_context>

<pallas_src>
import functools

import jax
import jax.numpy as jnp
from jax.experimental import pallas as pl
from jax.experimental.pallas import tpu as pltpu


def ai_brain_kernel(patches_ref, conv_w_ref, sens_x_ref, sens_w_ref,
                    wvis_ref, wsens_ref, w2_ref, out_ref, *, batch):
    B = batch

    # --- visual: one im2col matmul for all 4 conv output positions (bias
    #     folded via the ones column), ReLU, then MaxPool2d(2,2) == max over
    #     the 4 positions (sublane slices at multiples of 8 when B % 8 == 0).
    c = jnp.dot(patches_ref[...], conv_w_ref[...],
                preferred_element_type=jnp.float32)               # (4B, 16)
    c = jnp.maximum(c, 0.0)
    vis = jnp.maximum(jnp.maximum(c[0:B], c[B:2 * B]),
                      jnp.maximum(c[2 * B:3 * B], c[3 * B:4 * B]))  # (B, 16)

    # --- auditory/tactile/biometric as one block-diagonal matmul; col 32 of
    #     the result is exactly 1.0 (ones column passed through) so the fused
    #     bias row of wsens is applied by the next matmul.
    sens = jnp.dot(sens_x_ref[...], sens_w_ref[...],
                   preferred_element_type=jnp.float32)            # (B, 33)

    # --- fused decision_layer[0] / amygdala / hippocampus matmul without ever
    #     materializing `combined`: split-accumulate vis + sensory rows.
    #     Cols: 0:32 dec hidden (pre-ReLU), 32:48 amy, 48:64 hip,
    #           64:67 dec_b2 (via bias row), 67:128 zeros.
    big = (jnp.dot(vis, wvis_ref[...], preferred_element_type=jnp.float32)
           + jnp.dot(sens, wsens_ref[...], preferred_element_type=jnp.float32))

    # --- decision head: out = big + relu(big) @ w2_pad.
    #     w2_pad is nonzero only at rows 0:32 x cols 64:67, so cols 64:67
    #     become dec_b2 + relu(hidden) @ dec_w2 and every other column of
    #     `big` passes through untouched.  One unmasked (B,128) store.
    out_ref[...] = big + jnp.dot(jnp.maximum(big, 0.0), w2_ref[...],
                                 preferred_element_type=jnp.float32)


def init_params(key):
    ks = jax.random.split(key, 16)

    def u(k, shape, fan_in):
        bound = 1.0 / jnp.sqrt(jnp.float32(fan_in))
        return jax.random.uniform(k, shape, jnp.float32, -bound, bound)

    return {
        # Conv2d(3, 16, k=3): weight (16, 3, 3, 3), bias (16,)
        "conv_w": u(ks[0], (16, 3, 3, 3), 3 * 3 * 3),
        "conv_b": u(ks[1], (16,), 3 * 3 * 3),
        # Linear layers stored (in, out)
        "aud_w": u(ks[2], (20, 16), 20), "aud_b": u(ks[3], (16,), 20),
        "tac_w": u(ks[4], (5, 8), 5),    "tac_b": u(ks[5], (8,), 5),
        "bio_w": u(ks[6], (5, 8), 5),    "bio_b": u(ks[7], (8,), 5),
        "dec_w1": u(ks[8], (48, 32), 48), "dec_b1": u(ks[9], (32,), 48),
        "dec_w2": u(ks[10], (32, 3), 32), "dec_b2": u(ks[11], (3,), 32),
        "amy_w": u(ks[12], (48, 16), 48), "amy_b": u(ks[13], (16,), 48),
        "hip_w": u(ks[14], (48, 16), 48), "hip_b": u(ks[15], (16,), 48),
    }


def ai_brain_forward(params, visual, auditory, tactile, biometric):
    B = visual.shape[0]
    assert visual.shape[1:] == (3, 2, 2), "decision_layer(48) forces 2x2 spatial"
    f32 = jnp.float32

    # --- glue: im2col for the 3x3, pad=1 conv on a 2x2 image (4 positions),
    #     stacked position-major, plus a ones column for the bias.
    xpad = jnp.pad(visual.astype(f32), ((0, 0), (0, 0), (1, 1), (1, 1)))
    patch_list = []
    for oh in range(2):
        for ow in range(2):
            # flatten order (cin, kh, kw) matches the conv weight reshape below
            patch_list.append(xpad[:, :, oh:oh + 3, ow:ow + 3].reshape(B, 27))
    patches = jnp.concatenate(patch_list, axis=0)                          # (4B, 27)
    patches_aug = jnp.concatenate(
        [patches, jnp.ones((4 * B, 1), f32)], axis=1)                      # (4B, 28)

    conv_w2d = params["conv_w"].reshape(16, 27).T.astype(f32)              # (27, 16)
    conv_w_aug = jnp.concatenate(
        [conv_w2d, params["conv_b"].reshape(1, 16).astype(f32)], axis=0)   # (28, 16)

    # --- sensory inputs packed with a ones column; block-diagonal weight that
    #     also forwards the ones column (col 32) for downstream bias folding.
    sensory_x = jnp.concatenate(
        [auditory, tactile, biometric, jnp.ones((B, 1), f32)],
        axis=1).astype(f32)                                                # (B, 31)
    sw = jnp.zeros((31, 33), f32)
    sw = sw.at[0:20, 0:16].set(params["aud_w"].astype(f32))
    sw = sw.at[20:25, 16:24].set(params["tac_w"].astype(f32))
    sw = sw.at[25:30, 24:32].set(params["bio_w"].astype(f32))
    sw = sw.at[30, 0:16].set(params["aud_b"].astype(f32))
    sw = sw.at[30, 16:24].set(params["tac_b"].astype(f32))
    sw = sw.at[30, 24:32].set(params["bio_b"].astype(f32))
    sw = sw.at[30, 32].set(1.0)                                            # pass ones

    # --- fused combined-consumer weights, pre-split (vis rows / sensory rows)
    #     so the kernel never slices weight sublanes; the bias row rides on
    #     the ones column of the sensory block.
    wvis = jnp.zeros((16, 128), f32)
    wvis = wvis.at[:, 0:32].set(params["dec_w1"][0:16].astype(f32))
    wvis = wvis.at[:, 32:48].set(params["amy_w"][0:16].astype(f32))
    wvis = wvis.at[:, 48:64].set(params["hip_w"][0:16].astype(f32))

    wsens = jnp.zeros((33, 128), f32)
    wsens = wsens.at[0:32, 0:32].set(params["dec_w1"][16:48].astype(f32))
    wsens = wsens.at[0:32, 32:48].set(params["amy_w"][16:48].astype(f32))
    wsens = wsens.at[0:32, 48:64].set(params["hip_w"][16:48].astype(f32))
    wsens = wsens.at[32, 0:32].set(params["dec_b1"].astype(f32))
    wsens = wsens.at[32, 32:48].set(params["amy_b"].astype(f32))
    wsens = wsens.at[32, 48:64].set(params["hip_b"].astype(f32))
    wsens = wsens.at[32, 64:67].set(params["dec_b2"].astype(f32))

    w2_pad = jnp.zeros((128, 128), f32)
    w2_pad = w2_pad.at[0:32, 64:67].set(params["dec_w2"].astype(f32))

    args = (patches_aug, conv_w_aug, sensory_x, sw, wvis, wsens, w2_pad)

    vmem = pltpu.MemorySpace.VMEM
    out = pl.pallas_call(
        functools.partial(ai_brain_kernel, batch=B),
        out_shape=jax.ShapeDtypeStruct((B, 128), f32),
        in_specs=[pl.BlockSpec(memory_space=vmem) for _ in args],
        out_specs=pl.BlockSpec(memory_space=vmem),
    )(*args)

    dec = out[:, 64:67]
    amy = out[:, 32:48]
    hip = out[:, 48:64]
    return dec, amy, hip


def ai_brain_reference(params, visual, auditory, tactile, biometric):
    """Pure-JAX reference matching the (shape-corrected) PyTorch module."""
    B = visual.shape[0]
    conv = jax.lax.conv_general_dilated(
        visual, params["conv_w"], window_strides=(1, 1),
        padding=((1, 1), (1, 1)),
        dimension_numbers=("NCHW", "OIHW", "NCHW"))
    conv = conv + params["conv_b"].reshape(1, 16, 1, 1)
    conv = jnp.maximum(conv, 0.0)
    pooled = jnp.max(conv, axis=(2, 3))                          # MaxPool2d(2,2) on 2x2
    vis = pooled.reshape(B, -1)                                   # (B, 16)
    aud = auditory @ params["aud_w"] + params["aud_b"]
    tac = tactile @ params["tac_w"] + params["tac_b"]
    bio = biometric @ params["bio_w"] + params["bio_b"]
    combined = jnp.concatenate([vis, aud, tac, bio], axis=1)      # (B, 48)
    h = jnp.maximum(combined @ params["dec_w1"] + params["dec_b1"], 0.0)
    dec = h @ params["dec_w2"] + params["dec_b2"]
    amy = combined @ params["amy_w"] + params["amy_b"]
    hip = combined @ params["hip_w"] + params["hip_b"]
    return dec, amy, hip


if __name__ == "__main__":
    key = jax.random.PRNGKey(0)
    kp, kv, ka, kt, kb = jax.random.split(key, 5)

    params = init_params(kp)

    B = 8
    visual = jax.random.normal(kv, (B, 3, 2, 2), jnp.float32)     # NCHW
    auditory = jax.random.normal(ka, (B, 20), jnp.float32)
    tactile = jax.random.normal(kt, (B, 5), jnp.float32)
    biometric = jax.random.normal(kb, (B, 5), jnp.float32)

    fwd = jax.jit(ai_brain_forward)
    dec, amy, hip = fwd(params, visual, auditory, tactile, biometric)
    jax.block_until_ready((dec, amy, hip))

    assert dec.shape == (B, 3) and amy.shape == (B, 16) and hip.shape == (B, 16)
    assert jnp.all(jnp.isfinite(dec)) and jnp.all(jnp.isfinite(amy)) and jnp.all(jnp.isfinite(hip))

    # Correctness against the pure-JAX reference (loose tol for MXU precision).
    rdec, ramy, rhip = ai_brain_reference(params, visual, auditory, tactile, biometric)
    assert jnp.allclose(dec, rdec, atol=2e-2, rtol=2e-2)
    assert jnp.allclose(amy, ramy, atol=2e-2, rtol=2e-2)
    assert jnp.allclose(hip, rhip, atol=2e-2, rtol=2e-2)

    print("KERNEL_OK")
</pallas_src>

<mosaic_0001>
module attributes {stable_mosaic.version = 11 : i64} {
  func.func @ai_brain_kernel(%arg0: memref<32x28xf32, #tpu.memory_space<vmem>>, %arg1: memref<28x16xf32, #tpu.memory_space<vmem>>, %arg2: memref<8x31xf32, #tpu.memory_space<vmem>>, %arg3: memref<31x33xf32, #tpu.memory_space<vmem>>, %arg4: memref<16x128xf32, #tpu.memory_space<vmem>>, %arg5: memref<33x128xf32, #tpu.memory_space<vmem>>, %arg6: memref<128x128xf32, #tpu.memory_space<vmem>>, %arg7: memref<8x128xf32, #tpu.memory_space<vmem>>) attributes {dimension_semantics = [], scalar_prefetch = 0 : i64, scratch_operands = 0 : i64, tpu.core_type = #tpu.core_type<tc>} {
    %c0 = arith.constant 0 : index
    %c0_0 = arith.constant 0 : index
    %0 = vector.load %arg0[%c0, %c0_0] : memref<32x28xf32, #tpu.memory_space<vmem>>, vector<32x28xf32>
    %c0_1 = arith.constant 0 : index
    %c0_2 = arith.constant 0 : index
    %1 = vector.load %arg1[%c0_1, %c0_2] : memref<28x16xf32, #tpu.memory_space<vmem>>, vector<28x16xf32>
    %cst = arith.constant dense<0.000000e+00> : vector<32x16xf32>
    %2 = tpu.matmul %0, %1, %cst {dimension_numbers = #tpu.dot_dimension_numbers<[1], [0], [0], [1], [0, 0, 1, 1], [], []>} : vector<32x28xf32>, vector<28x16xf32>, vector<32x16xf32> -> vector<32x16xf32>
    %cst_3 = arith.constant 0.000000e+00 : f32
    %3 = vector.broadcast %cst_3 : f32 to vector<32x16xf32>
    %4 = arith.maximumf %2, %3 : vector<32x16xf32>
    %5 = vector.extract_strided_slice %4 {offsets = [0, 0], sizes = [8, 16], strides = [1, 1]} : vector<32x16xf32> to vector<8x16xf32>
    %6 = vector.extract_strided_slice %4 {offsets = [8, 0], sizes = [8, 16], strides = [1, 1]} : vector<32x16xf32> to vector<8x16xf32>
    %7 = arith.maximumf %5, %6 : vector<8x16xf32>
    %8 = vector.extract_strided_slice %4 {offsets = [16, 0], sizes = [8, 16], strides = [1, 1]} : vector<32x16xf32> to vector<8x16xf32>
    %9 = vector.extract_strided_slice %4 {offsets = [24, 0], sizes = [8, 16], strides = [1, 1]} : vector<32x16xf32> to vector<8x16xf32>
    %10 = arith.maximumf %8, %9 : vector<8x16xf32>
    %11 = arith.maximumf %7, %10 : vector<8x16xf32>
    %c0_4 = arith.constant 0 : index
    %c0_5 = arith.constant 0 : index
    %12 = vector.load %arg2[%c0_4, %c0_5] : memref<8x31xf32, #tpu.memory_space<vmem>>, vector<8x31xf32>
    %c0_6 = arith.constant 0 : index
    %c0_7 = arith.constant 0 : index
    %13 = vector.load %arg3[%c0_6, %c0_7] : memref<31x33xf32, #tpu.memory_space<vmem>>, vector<31x33xf32>
    %cst_8 = arith.constant dense<0.000000e+00> : vector<8x33xf32>
    %14 = tpu.matmul %12, %13, %cst_8 {dimension_numbers = #tpu.dot_dimension_numbers<[1], [0], [0], [1], [0, 0, 1, 1], [], []>} : vector<8x31xf32>, vector<31x33xf32>, vector<8x33xf32> -> vector<8x33xf32>
    %c0_9 = arith.constant 0 : index
    %c0_10 = arith.constant 0 : index
    %15 = vector.load %arg4[%c0_9, %c0_10] : memref<16x128xf32, #tpu.memory_space<vmem>>, vector<16x128xf32>
    %cst_11 = arith.constant dense<0.000000e+00> : vector<8x128xf32>
    %16 = tpu.matmul %11, %15, %cst_11 {dimension_numbers = #tpu.dot_dimension_numbers<[1], [0], [0], [1], [0, 0, 1, 1], [], []>} : vector<8x16xf32>, vector<16x128xf32>, vector<8x128xf32> -> vector<8x128xf32>
    %c0_12 = arith.constant 0 : index
    %c0_13 = arith.constant 0 : index
    %17 = vector.load %arg5[%c0_12, %c0_13] : memref<33x128xf32, #tpu.memory_space<vmem>>, vector<33x128xf32>
    %cst_14 = arith.constant dense<0.000000e+00> : vector<8x128xf32>
    %18 = tpu.matmul %14, %17, %cst_14 {dimension_numbers = #tpu.dot_dimension_numbers<[1], [0], [0], [1], [0, 0, 1, 1], [], []>} : vector<8x33xf32>, vector<33x128xf32>, vector<8x128xf32> -> vector<8x128xf32>
    %19 = arith.addf %16, %18 : vector<8x128xf32>
    %cst_15 = arith.constant 0.000000e+00 : f32
    %20 = vector.broadcast %cst_15 : f32 to vector<8x128xf32>
    %21 = arith.maximumf %19, %20 : vector<8x128xf32>
    %c0_16 = arith.constant 0 : index
    %c0_17 = arith.constant 0 : index
    %22 = vector.load %arg6[%c0_16, %c0_17] : memref<128x128xf32, #tpu.memory_space<vmem>>, vector<128x128xf32>
    %cst_18 = arith.constant dense<0.000000e+00> : vector<8x128xf32>
    %23 = tpu.matmul %21, %22, %cst_18 {dimension_numbers = #tpu.dot_dimension_numbers<[1], [0], [0], [1], [0, 0, 1, 1], [], []>} : vector<8x128xf32>, vector<128x128xf32>, vector<8x128xf32> -> vector<8x128xf32>
    %24 = arith.addf %19, %23 : vector<8x128xf32>
    %c0_19 = arith.constant 0 : index
    %c0_20 = arith.constant 0 : index
    %25 = vector.load %arg7[%c0_19, %c0_20] : memref<8x128xf32, #tpu.memory_space<vmem>>, vector<8x128xf32>
    tpu.vector_store %arg7[%c0_19, %c0_20], %24 {strides = array<i32>} : memref<8x128xf32, #tpu.memory_space<vmem>>, vector<8x128xf32>,
    return
  }
}

</mosaic_0001>

<llo_original>
// kernel: ai_brain_forward.1
$region0: #{ai_brain_forward.1}
  #allocation0 [shape = 'u32[]', space=smem, size = 0x4, offset = 0x4, fixed_abs, tag = 'smem constant byte address 0x4 - core index']
  #allocation1 [shape = 'u32[72,128]{1,0:T(1,128)}', space=vmem, size = 0x9000, scoped, tag = 'internal scratch']
  %s0 = inlined_call_operand.vmem [shape: f32[32,28], index: 0, kind: input, shape index: {}]
  %s1 = inlined_call_operand.vmem [shape: f32[28,16], index: 1, kind: input, shape index: {}]
  %s2 = inlined_call_operand.vmem [shape: f32[8,31], index: 2, kind: input, shape index: {}]
  %s3 = inlined_call_operand.vmem [shape: f32[31,33], index: 3, kind: input, shape index: {}]
  %s4 = inlined_call_operand.vmem [shape: f32[16,128], index: 4, kind: input, shape index: {}]
  %s5 = inlined_call_operand.vmem [shape: f32[33,128], index: 5, kind: input, shape index: {}]
  %s6 = inlined_call_operand.vmem [shape: f32[128,128], index: 6, kind: input, shape index: {}]
  %s7 = inlined_call_operand.vmem [shape: f32[8,128], index: 7, kind: output, shape index: {}]
  %s8 = sld [smem:[#allocation0]]
  $region38: #{ai_brain_forward.1} parent=0
    _
  %s10 = ssub.s32 1, %s8
  %s11 = scalar_select 0, %s10, %s8
  // Predicated region
  $region2: #{ai_brain_forward.1} parent=0 // pred_check
    _
  $region3: #{ai_brain_forward.1} parent=0 // pred_check_branch
    %13 = sbr.rel (0) target = $region5
  $region4: #{ai_brain_forward.1} parent=0 // pred_region
    _
  $region5: #{ai_brain_forward.1} parent=0 // pred_fallthru
    _
  // Predicated region
  $region6: #{ai_brain_forward.1} parent=0 // pred_check
    _
  $region7: #{ai_brain_forward.1} parent=0 // pred_check_branch
    %15 = sbr.rel (0) target = $region9
  $region8: #{ai_brain_forward.1} parent=0 // pred_region
    _
  $region9: #{ai_brain_forward.1} parent=0 // pred_fallthru
    _
  // Predicated region
  $region10: #{ai_brain_forward.1} parent=0 // pred_check
    _
  $region11: #{ai_brain_forward.1} parent=0 // pred_check_branch
    %17 = sbr.rel (0) target = $region13
  $region12: #{ai_brain_forward.1} parent=0 // pred_region
    _
  $region13: #{ai_brain_forward.1} parent=0 // pred_fallthru
    _
  // Predicated region
  $region14: #{ai_brain_forward.1} parent=0 // pred_check
    _
  $region15: #{ai_brain_forward.1} parent=0 // pred_check_branch
    %19 = sbr.rel (0) target = $region17
  $region16: #{ai_brain_forward.1} parent=0 // pred_region
    _
  $region17: #{ai_brain_forward.1} parent=0 // pred_fallthru
    _
  // Predicated region
  $region18: #{ai_brain_forward.1} parent=0 // pred_check
    _
  $region19: #{ai_brain_forward.1} parent=0 // pred_check_branch
    %21 = sbr.rel (0) target = $region21
  $region20: #{ai_brain_forward.1} parent=0 // pred_region
    _
  $region21: #{ai_brain_forward.1} parent=0 // pred_fallthru
    _
  // Predicated region
  $region22: #{ai_brain_forward.1} parent=0 // pred_check
    _
  $region23: #{ai_brain_forward.1} parent=0 // pred_check_branch
    %23 = sbr.rel (0) target = $region25
  $region24: #{ai_brain_forward.1} parent=0 // pred_region
    _
  $region25: #{ai_brain_forward.1} parent=0 // pred_fallthru
    _
  // Predicated region
  $region26: #{ai_brain_forward.1} parent=0 // pred_check
    _
  $region27: #{ai_brain_forward.1} parent=0 // pred_check_branch
    %25 = sbr.rel (0) target = $region29
  $region28: #{ai_brain_forward.1} parent=0 // pred_region
    _
  $region29: #{ai_brain_forward.1} parent=0 // pred_fallthru
    _
  %v26 = vld [vmem:[%s0] sm:$0xff]
  %v27 = vld [vmem:[%s0 + $0x8] sm:$0xff]
  %v28 = vld [vmem:[%s0 + $0x10] sm:$0xff]
  %v29 = vld [vmem:[%s0 + $0x18] sm:$0xff]
  %v30 = vld [vmem:[%s1] sm:$0xff]
  %v31 = vld [vmem:[%s1 + $0x8] sm:$0xff]
  %v32 = vld [vmem:[%s1 + $0x10] sm:$0xff]
  %v33 = vld [vmem:[%s1 + $0x18] sm:$0xf]
  %vm34 = vcmask 228352
  %v36 = vsel %vm34, %v26, 0
  %v39 = vsel %vm34, %v27, 0
  %v42 = vsel %vm34, %v28, 0
  %v45 = vsel %vm34, %v29, 0
  %vm47 = vcmask 1043456
  %v49 = vsel %vm47, %v33, 0
  %51 = vmatpush.msra.mxu0 0.0
  %52 = vmatpush.msra.mxu0 0.0
  %53 = vmatpush.msra.mxu0 0.0
  %54 = vmatpush.msra.mxu0 0.0
  %55 = vmatpush.msra.mxu0 0.0
  %56 = vmatpush.msra.mxu0 0.0
  %57 = vmatpush.msra.mxu0 0.0
  %58 = vmatpush.msra.mxu0 0.0
  %59 = vmatpush.msra.mxu0 0.0
  %60 = vmatpush.msra.mxu0 0.0
  %61 = vmatpush.msra.mxu0 0.0
  %62 = vmatpush.msra.mxu0 0.0
  %63 = vmatpush.msra.mxu0 %v49
  %64 = vmatpush.msra.mxu0 %v32
  %65 = vmatpush.msra.mxu0 %v31
  %66 = vmatpush.msra.mxu0 %v30
  %67 = vmatmul.f32.gmra.mxu0 %v36
  %v68 = vpop.f32.mrf.mxu0
  %v69 = vadd.f32 0.0, %v68
  %70 = vmatmul.f32.gmra.mxu0 %v39
  %v71 = vpop.f32.mrf.mxu0
  %v72 = vadd.f32 0.0, %v71
  %73 = vmatmul.f32.gmra.mxu0 %v42
  %v74 = vpop.f32.mrf.mxu0
  %v75 = vadd.f32 0.0, %v74
  %76 = vmatmul.f32.gmra.mxu0 %v45
  %v77 = vpop.f32.mrf.mxu0
  %v78 = vadd.f32 0.0, %v77
  %79 = vdwg.mxu0
  %v80 = vmax.f32 %v69, 0.0
  %v81 = vmax.f32 %v72, 0.0
  %v82 = vmax.f32 %v75, 0.0
  %v83 = vmax.f32 %v78, 0.0
  %v84 = vmax.f32 %v80, %v81
  %v85 = vmax.f32 %v82, %v83
  %v86 = vmax.f32 %v84, %v85
  %v87 = vld [vmem:[%s2] sm:$0xff]
  %v88 = vld [vmem:[%s3] sm:$0xff]
  %v89 = vld [vmem:[%s3 + $0x8] sm:$0xff]
  %v90 = vld [vmem:[%s3 + $0x10] sm:$0xff]
  %v91 = vld [vmem:[%s3 + $0x18] sm:$0x7f]
  %vm92 = vcmask 252928
  %v94 = vsel %vm92, %v87, 0
  %vm96 = vcmask 1046528
  %v98 = vsel %vm96, %v91, 0
  %100 = vmatpush.msra.mxu0 0.0
  %101 = vmatpush.msra.mxu0 0.0
  %102 = vmatpush.msra.mxu0 0.0
  %103 = vmatpush.msra.mxu0 0.0
  %104 = vmatpush.msra.mxu0 0.0
  %105 = vmatpush.msra.mxu0 0.0
  %106 = vmatpush.msra.mxu0 0.0
  %107 = vmatpush.msra.mxu0 0.0
  %108 = vmatpush.msra.mxu0 0.0
  %109 = vmatpush.msra.mxu0 0.0
  %110 = vmatpush.msra.mxu0 0.0
  %111 = vmatpush.msra.mxu0 0.0
  %112 = vmatpush.msra.mxu0 %v98
  %113 = vmatpush.msra.mxu0 %v90
  %114 = vmatpush.msra.mxu0 %v89
  %115 = vmatpush.msra.mxu0 %v88
  %116 = vmatmul.f32.gmra.mxu0 %v94
  %v117 = vpop.f32.mrf.mxu0
  %v118 = vadd.f32 0.0, %v117
  %119 = vdwg.mxu0
  %v120 = vld [vmem:[%s4] sm:$0xff]
  %v121 = vld [vmem:[%s4 + $0x8] sm:$0xff]
  %v122 = vld [vmem:[%s5] sm:$0xff]
  %v123 = vld [vmem:[%s5 + $0x8] sm:$0xff]
  %v124 = vld [vmem:[%s5 + $0x10] sm:$0xff]
  %v125 = vld [vmem:[%s5 + $0x18] sm:$0xff]
  %v126 = vld [vmem:[%s5 + $0x20] sm:$0x1]
  %vm127 = vcmask 269312
  %v129 = vsel %vm127, %v118, 0
  %vm131 = vcmask 1040384
  %v133 = vsel %vm131, %v126, 0
  %135 = vmatpush.msra.mxu0 0.0
  %136 = vmatpush.msra.mxu0 0.0
  %137 = vmatpush.msra.mxu0 0.0
  %138 = vmatpush.msra.mxu0 0.0
  %139 = vmatpush.msra.mxu0 0.0
  %140 = vmatpush.msra.mxu0 0.0
  %141 = vmatpush.msra.mxu0 0.0
  %142 = vmatpush.msra.mxu0 0.0
  %143 = vmatpush.msra.mxu0 0.0
  %144 = vmatpush.msra.mxu0 0.0
  %145 = vmatpush.msra.mxu0 0.0
  %146 = vmatpush.msra.mxu0 %v133
  %147 = vmatpush.msra.mxu0 %v125
  %148 = vmatpush.msra.mxu0 %v124
  %149 = vmatpush.msra.mxu0 %v123
  %150 = vmatpush.msra.mxu0 %v122
  %151 = vmatmul.f32.gmra.mxu0 %v129
  %v152 = vpop.f32.mrf.mxu0
  %v153 = vadd.f32 0.0, %v152
  %154 = vdwg.mxu0
  %vm155 = vcmask 130048
  %v157 = vsel %vm155, %v86, 0
  %159 = vmatpush.msra.mxu0 0.0
  %160 = vmatpush.msra.mxu0 0.0
  %161 = vmatpush.msra.mxu0 0.0
  %162 = vmatpush.msra.mxu0 0.0
  %163 = vmatpush.msra.mxu0 0.0
  %164 = vmatpush.msra.mxu0 0.0
  %165 = vmatpush.msra.mxu0 0.0
  %166 = vmatpush.msra.mxu0 0.0
  %167 = vmatpush.msra.mxu0 0.0
  %168 = vmatpush.msra.mxu0 0.0
  %169 = vmatpush.msra.mxu0 0.0
  %170 = vmatpush.msra.mxu0 0.0
  %171 = vmatpush.msra.mxu0 0.0
  %172 = vmatpush.msra.mxu0 0.0
  %173 = vmatpush.msra.mxu0 %v121
  %174 = vmatpush.msra.mxu0 %v120
  %175 = vmatmul.f32.gmra.mxu0 %v157
  %v176 = vpop.f32.mrf.mxu0
  %v177 = vadd.f32 %v153, %v176
  %178 = vdwg.mxu0
  %v179 = vmax.f32 %v177, 0.0
  %v180 = vld [vmem:[%s6] sm:$0xff]
  %v181 = vld [vmem:[%s6 + $0x8] sm:$0xff]
  %v182 = vld [vmem:[%s6 + $0x10] sm:$0xff]
  %v183 = vld [vmem:[%s6 + $0x18] sm:$0xff]
  %v184 = vld [vmem:[%s6 + $0x20] sm:$0xff]
  %v185 = vld [vmem:[%s6 + $0x28] sm:$0xff]
  %v186 = vld [vmem:[%s6 + $0x30] sm:$0xff]
  %v187 = vld [vmem:[%s6 + $0x38] sm:$0xff]
  %v188 = vld [vmem:[%s6 + $0x40] sm:$0xff]
  %v189 = vld [vmem:[%s6 + $0x48] sm:$0xff]
  %v190 = vld [vmem:[%s6 + $0x50] sm:$0xff]
  %v191 = vld [vmem:[%s6 + $0x58] sm:$0xff]
  %v192 = vld [vmem:[%s6 + $0x60] sm:$0xff]
  %v193 = vld [vmem:[%s6 + $0x68] sm:$0xff]
  %v194 = vld [vmem:[%s6 + $0x70] sm:$0xff]
  %v195 = vld [vmem:[%s6 + $0x78] sm:$0xff]
  %196 = vmatpush.msra.mxu0 %v195
  %197 = vmatpush.msra.mxu0 %v194
  %198 = vmatpush.msra.mxu0 %v193
  %199 = vmatpush.msra.mxu0 %v192
  %200 = vmatpush.msra.mxu0 %v191
  %201 = vmatpush.msra.mxu0 %v190
  %202 = vmatpush.msra.mxu0 %v189
  %203 = vmatpush.msra.mxu0 %v188
  %204 = vmatpush.msra.mxu0 %v187
  %205 = vmatpush.msra.mxu0 %v186
  %206 = vmatpush.msra.mxu0 %v185
  %207 = vmatpush.msra.mxu0 %v184
  %208 = vmatpush.msra.mxu0 %v183
  %209 = vmatpush.msra.mxu0 %v182
  %210 = vmatpush.msra.mxu0 %v181
  %211 = vmatpush.msra.mxu0 %v180
  %212 = vmatmul.f32.gmra.mxu0 %v179
  %v213 = vpop.f32.mrf.mxu0
  %v214 = vadd.f32 0.0, %v213
  %215 = vdwg.mxu0
  %v216 = vadd.f32 %v177, %v214
  %217 = vst [vmem:[%s7] sm:$0xff] %v216
  // Predicated region
  $region30: #{ai_brain_forward.1} parent=0 // pred_check
    _
  $region31: #{ai_brain_forward.1} parent=0 // pred_check_branch
    %219 = sbr.rel (0) target = $region33
  $region32: #{ai_brain_forward.1} parent=0 // pred_region
    _
  $region33: #{ai_brain_forward.1} parent=0 // pred_fallthru
    _
  // Predicated region
  $region34: #{ai_brain_forward.1} parent=0 // pred_check
    _
  $region35: #{ai_brain_forward.1} parent=0 // pred_check_branch
    %221 = sbr.rel (0) target = $region37
  $region36: #{ai_brain_forward.1} parent=0 // pred_region
    _
  $region37: #{ai_brain_forward.1} parent=0 // pred_fallthru
    _

</llo_original>
